<compile_context>
chip_gen: v6e
topology: v6e:2x2x1
jax: 0.10.0
libtpu: 0.0.40
codegen_flags: <defaults>
</compile_context>

<pallas_src>
import functools
import math

import jax
import jax.numpy as jnp
from jax import lax
from jax.experimental import pallas as pl
from jax.experimental.pallas import tpu as pltpu

_LANES = 128
# Target bytes per block per buffer.  Input + output, double-buffered, is
# ~4x this value of VMEM: safe on every TPU generation's default limit.
_TARGET_BLOCK_BYTES = 1 << 20  # 1 MiB


def _min_sublanes(dtype):
    """Minimum packed sublane count for a dtype (f32->8, bf16->16, int8->32)."""
    itemsize = jnp.dtype(dtype).itemsize
    return max(8, 8 * (4 // max(itemsize, 1)))


def _apply_activation(x, activation_type):
    if activation_type == "gelu":
        # Exact GELU (matches torch.nn.GELU(approximate='none')).
        inv_sqrt2 = jnp.asarray(1.0 / math.sqrt(2.0), x.dtype)
        return x * 0.5 * (1.0 + lax.erf(x * inv_sqrt2))
    elif activation_type == "relu":
        return jnp.maximum(x, jnp.zeros((), x.dtype))
    elif activation_type == "swish":
        return x * jax.nn.sigmoid(x)
    else:
        raise ValueError(f"unsupported activation_type: {activation_type}")


def _activation_kernel(x_ref, o_ref, *, activation_type):
    o_ref[...] = _apply_activation(x_ref[...], activation_type)


def activations_forward(x, activation_type="gelu"):
    """Pallas equivalent of Activations(activation_type).forward(x)."""
    orig_shape = x.shape
    dtype = x.dtype
    n = x.size
    if n == 0:
        return x

    sub_min = _min_sublanes(dtype)
    itemsize = jnp.dtype(dtype).itemsize

    flat = x.reshape(-1)

    # Widest lane-dense slab width (multiple of 128) that divides n exactly.
    width = 0
    for cand in (2048, 1024, 512, 256, _LANES):
        if n % cand == 0:
            width = cand
            break

    if width == 0:
        # Ragged element count: pad once up to a full minimum tile.  Only
        # path that costs an extra HBM pass; rare for real model shapes.
        width = _LANES
        tile_elems = sub_min * width
        n_pad = (-n) % tile_elems
        flat = jnp.pad(flat, (0, n_pad))
    else:
        n_pad = 0

    rows = flat.size // width
    slab = flat.reshape(rows, width)

    # Big, dtype-aware, vreg-aligned block: ~_TARGET_BLOCK_BYTES per buffer.
    target_rows = max(sub_min, _TARGET_BLOCK_BYTES // (width * itemsize))
    target_rows = (target_rows // sub_min) * sub_min
    if rows <= target_rows:
        # Whole slab fits in one block; full-array-dim blocks are always legal.
        block_rows = rows
    else:
        # Multiple of the packed sublane minimum; Pallas masks the ragged
        # final block if rows is not an exact multiple.
        block_rows = target_rows

    grid = (pl.cdiv(rows, block_rows),)
    kernel = functools.partial(_activation_kernel, activation_type=activation_type)

    out = pl.pallas_call(
        kernel,
        out_shape=jax.ShapeDtypeStruct((rows, width), dtype),
        grid_spec=pltpu.PrefetchScalarGridSpec(
            num_scalar_prefetch=0,
            grid=grid,
            in_specs=[pl.BlockSpec((block_rows, width), lambda i: (i, 0))],
            out_specs=pl.BlockSpec((block_rows, width), lambda i: (i, 0)),
        ),
        compiler_params=pltpu.CompilerParams(
            dimension_semantics=("parallel",),
        ),
    )(slab)

    out_flat = out.reshape(-1)
    if n_pad:
        out_flat = out_flat[:n]
    return out_flat.reshape(orig_shape)


if __name__ == "__main__":
    key = jax.random.PRNGKey(0)

    # Small NCHW-style input consistent with a vision-side activation in GeMKR.
    x = jax.random.normal(key, (2, 4, 16, 16), dtype=jnp.float32)
    y = jax.block_until_ready(activations_forward(x, activation_type="gelu"))
    ref = x * 0.5 * (1.0 + lax.erf(x / jnp.sqrt(2.0)))
    assert y.shape == x.shape and y.dtype == x.dtype
    assert jnp.max(jnp.abs(y - ref)) < 1e-5

    # Ragged element count -> exercises the (rare) padding fallback path.
    x2 = jax.random.normal(jax.random.PRNGKey(1), (3, 5, 7), dtype=jnp.float32)
    y2 = jax.block_until_ready(activations_forward(x2, activation_type="relu"))
    assert jnp.array_equal(y2, jnp.maximum(x2, 0.0))

    # Swish path, bf16 (checks dtype-aware sublane packing).
    x3 = jax.random.normal(jax.random.PRNGKey(2), (2, 8, 32), dtype=jnp.bfloat16)
    y3 = jax.block_until_ready(activations_forward(x3, activation_type="swish"))
    ref3 = x3 * jax.nn.sigmoid(x3)
    assert jnp.max(jnp.abs(y3.astype(jnp.float32) - ref3.astype(jnp.float32))) < 2e-2

    print("KERNEL_OK")
</pallas_src>

<mosaic_0001>
module attributes {stable_mosaic.version = 11 : i64} {
  func.func @_activation_kernel(%arg0: i32, %arg1: memref<1x2048xf32, #tpu.memory_space<vmem>>, %arg2: memref<1x2048xf32, #tpu.memory_space<vmem>>) attributes {dimension_semantics = [#tpu.dimension_semantics<parallel>], iteration_bounds = array<i64: 1>, scalar_prefetch = 0 : i64, scratch_operands = 0 : i64, tpu.core_type = #tpu.core_type<tc>, window_params = [{transform_indices = @transform_0, window_bounds = array<i64: 1, 2048>}, {transform_indices = @transform_1, window_bounds = array<i64: 1, 2048>}]} {
    %c0 = arith.constant 0 : index
    %c0_0 = arith.constant 0 : index
    %0 = vector.load %arg1[%c0, %c0_0] : memref<1x2048xf32, #tpu.memory_space<vmem>>, vector<1x2048xf32>
    %cst = arith.constant 5.000000e-01 : f32
    %1 = vector.broadcast %cst : f32 to vector<1x2048xf32>
    %2 = arith.mulf %0, %1 : vector<1x2048xf32>
    %cst_1 = arith.constant 0.707106769 : f32
    %3 = vector.broadcast %cst_1 : f32 to vector<1x2048xf32>
    %4 = arith.mulf %0, %3 : vector<1x2048xf32>
    %5 = math.erf %4 : vector<1x2048xf32>
    %cst_2 = arith.constant 1.000000e+00 : f32
    %6 = vector.broadcast %cst_2 : f32 to vector<1x2048xf32>
    %7 = arith.addf %6, %5 : vector<1x2048xf32>
    %8 = arith.mulf %2, %7 : vector<1x2048xf32>
    %c0_3 = arith.constant 0 : index
    %c0_4 = arith.constant 0 : index
    %9 = vector.load %arg2[%c0_3, %c0_4] : memref<1x2048xf32, #tpu.memory_space<vmem>>, vector<1x2048xf32>
    tpu.vector_store %arg2[%c0_3, %c0_4], %8 {strides = array<i32>} : memref<1x2048xf32, #tpu.memory_space<vmem>>, vector<1x2048xf32>,
    return
  }
  func.func @transform_0(%arg0: i32) -> (i32, i32) {
    %c0_i32 = arith.constant 0 : i32
    %c0_i32_0 = arith.constant 0 : i32
    return %arg0, %c0_i32 : i32, i32
  }
  func.func @transform_1(%arg0: i32) -> (i32, i32) {
    %c0_i32 = arith.constant 0 : i32
    %c0_i32_0 = arith.constant 0 : i32
    return %arg0, %c0_i32 : i32, i32
  }
}

</mosaic_0001>

<llo_original>
// kernel: tpu_custom_call.1
$region0: #{tpu_custom_call.1}
  #allocation0 [shape = 'u32[]', space=smem, size = 0x4, offset = 0x4, fixed_abs, tag = 'smem constant byte address 0x4 - core index']
  #allocation1 [shape = 'u32[144,128]{1,0:T(1,128)}', space=vmem, size = 0x12000, scoped, tag = 'internal scratch']
  %s0 = inlined_call_operand.hbm [shape: f32[1,2048], index: 0, kind: input, shape index: {}]
  %s1 = inlined_call_operand.hbm [shape: f32[1,2048], index: 1, kind: output, shape index: {}]
  %s2 = sld [smem:[#allocation0]]
  $region18: #{tpu_custom_call.1} parent=0
    _
  %s4 = ssub.s32 1, %s2
  %s5 = scalar_select 0, %s4, %s2
  $region1: #{tpu_custom_call.1} parent=0
    #allocation2 [shape = 'u8[8192]{0}', space=vmem, size = 0x2000, scoped, tag = 'input window, operand 0, single buffered']
    #allocation3 [shape = 's32[1]{0}', space=sflag, size = 0x4, scoped, tag = 'scoped memory for tpu_custom_call.1']
    #allocation4 [shape = 's32[1]{0}', space=sflag, size = 0x4, scoped, tag = 'scoped memory for tpu_custom_call.1']
    #allocation5 [shape = 'u8[8192]{0}', space=vmem, size = 0x2000, scoped, tag = 'output window, operand 0, single buffered']
    %6 = vsyncpa [#allocation3], 0
    %7 = vsyncpa [#allocation4], 0
    // Predicated region
    $region2: #{tpu_custom_call.1} parent=1 // pred_check
      _
    $region3: #{tpu_custom_call.1} parent=1 // pred_check_branch
      %9 = sbr.rel (0) target = $region5
    $region4: #{tpu_custom_call.1} parent=1 // pred_region
      %s11 = ssub.s32 256, 256
      %12 = vsyncadd [#allocation3], %s11
      %s14 = sshll.u32 [#allocation2], 4
      %s15 = int_to_ptr.vmem [resolvable:$true] %s14
      %17 = dma.hbm_to_vmem [thread:$0]  %s0, 256, %s15, [#allocation3]
    $region5: #{tpu_custom_call.1} parent=1 // pred_fallthru
      _
    // Predicated region
    $region6: #{tpu_custom_call.1} parent=1 // pred_check
      _
    $region7: #{tpu_custom_call.1} parent=1 // pred_check_branch
      %19 = sbr.rel (0) target = $region9
    $region8: #{tpu_custom_call.1} parent=1 // pred_region
      %20 = dma.done [#allocation3], 256
    $region9: #{tpu_custom_call.1} parent=1 // pred_fallthru
      _
    %v21 = vld [vmem:[#allocation2] sm:$0xff]
    %v22 = vld [vmem:[#allocation2 + $0x8] sm:$0xff]
    %v23 = vmul.f32 %v21, 0.5
    %v24 = vmul.f32 %v22, 0.5
    %v25 = vmul.f32 %v21, 0.70710677
    %v26 = vmul.f32 %v22, 0.70710677
    %v27 = verf.f32.pop %v25
    %v28 = verf.f32.pop %v26
    %v29 = vadd.f32 %v27, 1.0
    %v30 = vadd.f32 %v28, 1.0
    %v31 = vmul.f32 %v23, %v29
    %v32 = vmul.f32 %v24, %v30
    %33 = vst [vmem:[#allocation5] sm:$0xff] %v31
    %34 = vst [vmem:[#allocation5 + $0x8] sm:$0xff] %v32
    // Predicated region
    $region10: #{tpu_custom_call.1} parent=1 // pred_check
      _
    $region11: #{tpu_custom_call.1} parent=1 // pred_check_branch
      %36 = sbr.rel (0) target = $region13
    $region12: #{tpu_custom_call.1} parent=1 // pred_region
      %s38 = ssub.s32 256, 256
      %39 = vsyncadd [#allocation4], %s38
      %s41 = sshll.u32 [#allocation5], 4
      %s42 = int_to_ptr.vmem [resolvable:$true] %s41
      %44 = dma.vmem_to_hbm [thread:$0]  %s42, 256, %s1, [#allocation4]
    $region13: #{tpu_custom_call.1} parent=1 // pred_fallthru
      _
    // Predicated region
    $region14: #{tpu_custom_call.1} parent=1 // pred_check
      _
    $region15: #{tpu_custom_call.1} parent=1 // pred_check_branch
      %46 = sbr.rel (0) target = $region17
    $region16: #{tpu_custom_call.1} parent=1 // pred_region
      %47 = dma.done [#allocation4], 256
    $region17: #{tpu_custom_call.1} parent=1 // pred_fallthru
      _
    %48 = vsyncpa [#allocation3], 1
    %49 = vsyncpa [#allocation4], 1

</llo_original>
